<compile_context>
chip_gen: v7x
topology: tpu7x:2x2x1
jax: 0.10.0
libtpu: 0.0.40
codegen_flags: <defaults>
</compile_context>

<pallas_src>
import numpy as np
import jax
import jax.numpy as jnp
from jax.experimental import pallas as pl
from jax.experimental.pallas import tpu as pltpu

LANES = 128          # lane width of a vreg: keep the last dim exactly 128
TILE_ROWS = 128      # sublane-aligned (multiple of 8) row tile per grid step


def _copy_kernel(x_ref, o_ref):
    # Identity copy of one (TILE_ROWS, LANES) tile: VMEM load -> VMEM store,
    # pipelined HBM<->VMEM by the BlockSpec machinery.
    o_ref[...] = x_ref[...]


def dummy_time_bucket_forward(x):
    """Pallas equivalent of DummyTimeBucket.forward: return a fresh copy of x.

    Works for any input shape: the array is viewed as a lane-dense
    (rows, 128) slab, copied tile-by-tile, and viewed back.
    """
    orig_shape = x.shape
    n = int(np.prod(orig_shape))

    # Lane-dense 2-D view, rows padded up to a multiple of the row tile.
    rows = -(-n // LANES)
    rows_pad = -(-rows // TILE_ROWS) * TILE_ROWS
    pad_amount = rows_pad * LANES - n

    flat = jnp.ravel(x)
    if pad_amount:
        flat = jnp.pad(flat, (0, pad_amount))
    x2 = flat.reshape(rows_pad, LANES)

    out2 = pl.pallas_call(
        _copy_kernel,
        grid=(rows_pad // TILE_ROWS,),
        out_shape=jax.ShapeDtypeStruct((rows_pad, LANES), x2.dtype),
        in_specs=[pl.BlockSpec((TILE_ROWS, LANES), lambda i: (i, 0))],
        out_specs=pl.BlockSpec((TILE_ROWS, LANES), lambda i: (i, 0)),
        compiler_params=pltpu.CompilerParams(
            dimension_semantics=("parallel",)),
    )(x2)

    out_flat = out2.reshape(-1)
    if pad_amount:
        out_flat = out_flat[:n]
    return out_flat.reshape(orig_shape)


if __name__ == "__main__":
    key = jax.random.PRNGKey(0)
    # sliCQ time-bucket shaped input:
    # (nb_samples, nb_channels, nb_f_bins, nb_slices, nb_t_bins)
    x = jax.random.normal(key, (2, 2, 16, 8, 64), dtype=jnp.float32)

    fwd = jax.jit(dummy_time_bucket_forward)
    out = fwd(x)
    jax.block_until_ready(out)

    assert out.shape == x.shape, out.shape
    assert out.dtype == x.dtype, out.dtype
    np.testing.assert_array_equal(np.asarray(out), np.asarray(x))
    print("KERNEL_OK")
</pallas_src>

<mosaic_0001>
module attributes {stable_mosaic.version = 11 : i64} {
  func.func @_copy_kernel(%arg0: i32, %arg1: memref<128x128xf32, #tpu.memory_space<vmem>>, %arg2: memref<128x128xf32, #tpu.memory_space<vmem>>) attributes {dimension_semantics = [#tpu.dimension_semantics<parallel>], iteration_bounds = array<i64: 2>, scalar_prefetch = 0 : i64, scratch_operands = 0 : i64, tpu.core_type = #tpu.core_type<tc>, window_params = [{transform_indices = @transform_0, window_bounds = array<i64: 128, 128>}, {transform_indices = @transform_1, window_bounds = array<i64: 128, 128>}]} {
    %c0 = arith.constant 0 : index
    %c0_0 = arith.constant 0 : index
    %0 = vector.load %arg1[%c0, %c0_0] : memref<128x128xf32, #tpu.memory_space<vmem>>, vector<128x128xf32>
    %c0_1 = arith.constant 0 : index
    %c0_2 = arith.constant 0 : index
    %1 = vector.load %arg2[%c0_1, %c0_2] : memref<128x128xf32, #tpu.memory_space<vmem>>, vector<128x128xf32>
    tpu.vector_store %arg2[%c0_1, %c0_2], %0 {strides = array<i32>} : memref<128x128xf32, #tpu.memory_space<vmem>>, vector<128x128xf32>,
    return
  }
  func.func @transform_0(%arg0: i32) -> (i32, i32) {
    %c0_i32 = arith.constant 0 : i32
    %c0_i32_0 = arith.constant 0 : i32
    return %arg0, %c0_i32 : i32, i32
  }
  func.func @transform_1(%arg0: i32) -> (i32, i32) {
    %c0_i32 = arith.constant 0 : i32
    %c0_i32_0 = arith.constant 0 : i32
    return %arg0, %c0_i32 : i32, i32
  }
}

</mosaic_0001>

<llo_original>
// kernel: dummy_time_bucket_forward.1
$region0: #{dummy_time_bucket_forward.1}
  #allocation0 [shape = 'u32[]', space=smem, size = 0x4, offset = 0x4, fixed_abs, tag = 'smem constant byte address 0x4 - core index']
  #allocation1 [shape = 'u32[144,128]{1,0:T(1,128)}', space=vmem, size = 0x12000, scoped, tag = 'internal scratch']
  %s0 = inlined_call_operand.vmem [shape: f32[256,128], index: 0, kind: input, shape index: {}]
  %s1 = inlined_call_operand.vmem [shape: f32[256,128], index: 1, kind: output, shape index: {}]
  %s2 = sld [smem:[#allocation0]]
  $region37: #{dummy_time_bucket_forward.1} parent=0
    _
  %s4 = ssub.s32 1, %s2
  %s5 = scalar_select 0, %s4, %s2
  loop: start=0, step=1, limit=4
  $region2: #{dummy_time_bucket_forward.1} parent=0 // loop_pre_header
    _
  $region3: #{dummy_time_bucket_forward.1} parent=0 // loop_header
    %s7 = sphi 0, %s11
    %p8 = scmp.ge.s32.totalorder %s7, 4
    %s17 = sphi 0, %s19
    %s20 = sphi 0, %s17
    %s21 = sphi 0, %s20
    %s37 = sphi 0, %s21
    %s43 = sphi 0, %s45
    %s46 = sphi 0, %s43
    %s47 = sphi 0, %s46
    %s63 = sphi 0, %s47
  $region4: #{dummy_time_bucket_forward.1} parent=0 // loop_header_branch
    %10 = sbr.rel (%p8) target = $region8
  $region5: #{dummy_time_bucket_forward.1} parent=0 // loop_body
    %s12 = ssub.s32 %s7, 1
    %s13 = ssub.s32 %s7, 2
    %s14 = sadd.s32 %s7, 1
    %s15 = ssub.s32 %s7, %s14
    %p16 = scmp.eq.s32.totalorder %s15, 0
    %s18 = sadd.s32 %s17, 1
    %s19 = scalar_select %p16, %s17, %s18
    %p22 = pneg %p16
    %p23 = scmp.eq.s32.totalorder %s7, 1
    %p24 = por %p22, %p23
    %p25 = scmp.ne.s32.totalorder %s17, %s20
    %p26 = scmp.eq.s32.totalorder %s7, 0
    %p27 = por %p25, %p26
    %p28 = scmp.ne.s32.totalorder %s17, %s20
    %p29 = scmp.eq.s32.totalorder %s12, 1
    %p30 = por %p28, %p29
    %p31 = scmp.ne.s32.totalorder %s20, %s21
    %p32 = scmp.eq.s32.totalorder %s12, 0
    %p33 = por %p31, %p32
    %p34 = scmp.ne.s32.totalorder %s20, %s21
    %p35 = scmp.eq.s32.totalorder %s13, 1
    %p36 = por %p34, %p35
    %p38 = scmp.ne.s32.totalorder %s21, %s37
    %p39 = scmp.eq.s32.totalorder %s13, 0
    %p40 = por %p38, %p39
    %s41 = ssub.s32 %s7, %s14
    %p42 = scmp.eq.s32.totalorder %s41, 0
    %s44 = sadd.s32 %s43, 1
    %s45 = scalar_select %p42, %s43, %s44
    %p48 = pneg %p42
    %p49 = scmp.eq.s32.totalorder %s7, 1
    %p50 = por %p48, %p49
    %p51 = scmp.ne.s32.totalorder %s43, %s46
    %p52 = scmp.eq.s32.totalorder %s7, 0
    %p53 = por %p51, %p52
    %p54 = scmp.ne.s32.totalorder %s43, %s46
    %p55 = scmp.eq.s32.totalorder %s12, 1
    %p56 = por %p54, %p55
    %p57 = scmp.ne.s32.totalorder %s46, %s47
    %p58 = scmp.eq.s32.totalorder %s12, 0
    %p59 = por %p57, %p58
    %p60 = scmp.ne.s32.totalorder %s46, %s47
    %p61 = scmp.eq.s32.totalorder %s13, 1
    %p62 = por %p60, %p61
    %p64 = scmp.ne.s32.totalorder %s47, %s63
    %p65 = scmp.eq.s32.totalorder %s13, 0
    %p66 = por %p64, %p65
    %p67 = scmp.le.s32.totalorder 1, %s7
    %p68 = scmp.lt.s32.totalorder %s7, 3
    %p69 = pnand %p67, %p68
    %p70 = pneg %p69
    // Predicated region
    $region9: #{dummy_time_bucket_forward.1} parent=5 // pred_check
      _
    $region10: #{dummy_time_bucket_forward.1} parent=5 // pred_check_branch
      %72 = sbr.rel (%p69) target = $region12
    $region11: #{dummy_time_bucket_forward.1} parent=5 // pred_region
      %s73 = ssub.s32 %s7, 1
    $region12: #{dummy_time_bucket_forward.1} parent=5 // pred_fallthru
      _
    %p74 = scmp.lt.s32.totalorder %s7, 2
    // Predicated region
    $region13: #{dummy_time_bucket_forward.1} parent=5 // pred_check
      %p75 = pneg %p74
    $region14: #{dummy_time_bucket_forward.1} parent=5 // pred_check_branch
      %77 = sbr.rel (%p75) target = $region16
    $region15: #{dummy_time_bucket_forward.1} parent=5 // pred_region
      // Predicated region
      $region17: #{dummy_time_bucket_forward.1} parent=15 // pred_check
        %p78 = pneg %p27
      $region18: #{dummy_time_bucket_forward.1} parent=15 // pred_check_branch
        %80 = sbr.rel (%p78) target = $region20
      $region19: #{dummy_time_bucket_forward.1} parent=15 // pred_region
        %s81 = smul.u32 16, %s7
        %p82 = scmp.lt.s32.totalorder %s81, 31
        %s83 = scalar_select %p82, %s81, 31
        %s84 = smul.addr %s83, 8
        %s85 = scalar_lea.vmem %s0, %s84
        %s86 = smul.u32 16, %s7
      $region20: #{dummy_time_bucket_forward.1} parent=15 // pred_fallthru
        _
    $region16: #{dummy_time_bucket_forward.1} parent=5 // pred_fallthru
      _
    %p87 = scmp.le.s32.totalorder 1, %s7
    %p88 = scmp.lt.s32.totalorder %s7, 3
    %p89 = pnand %p87, %p88
    %p90 = pneg %p89
    // Predicated region
    $region21: #{dummy_time_bucket_forward.1} parent=5 // pred_check
      _
    $region22: #{dummy_time_bucket_forward.1} parent=5 // pred_check_branch
      %92 = sbr.rel (%p89) target = $region24
    $region23: #{dummy_time_bucket_forward.1} parent=5 // pred_region
      %s93 = ssub.s32 %s7, 1
      %s94 = smul.u32 16, %s12
      %p95 = scmp.lt.s32.totalorder %s94, 31
      %s96 = scalar_select %p95, %s94, 31
      %s97 = smul.addr %s96, 8
      %s98 = scalar_lea.vmem %s0, %s97
      %p99 = pneg %p33
      %p100 = pneg %p30
      %p101 = pneg %p59
      %p102 = pneg %p56
      %s103 = smul.u32 16, %s12
      %p104 = scmp.lt.s32.totalorder %s103, 31
      %s105 = scalar_select %p104, %s103, 31
      %s106 = smul.addr %s105, 8
      %s107 = scalar_lea.vmem %s1, %s106
      %s108 = smul.u32 16, %s12
      %p109 = scmp.lt.s32.totalorder %s108, 31
      %s110 = scalar_select %p109, %s108, 31
      %s111 = smul.addr %s110, 8
      %s112 = scalar_lea.vmem %s0, %s111
      %s113 = smul.u32 16, %s12
      %s114 = smul.u32 16, %s12
      %p115 = scmp.lt.s32.totalorder %s114, 31
      %s116 = scalar_select %p115, %s114, 31
      %s117 = smul.addr %s116, 8
      %s118 = scalar_lea.vmem %s1, %s117
      %s119 = smul.u32 16, %s12
      %v120 = vld [vmem:[%s112] sm:$0xff]
      %v121 = vld [vmem:[%s112 + $0x8] sm:$0xff]
      %v122 = vld [vmem:[%s112 + $0x10] sm:$0xff]
      %v123 = vld [vmem:[%s112 + $0x18] sm:$0xff]
      %v124 = vld [vmem:[%s112 + $0x20] sm:$0xff]
      %v125 = vld [vmem:[%s112 + $0x28] sm:$0xff]
      %v126 = vld [vmem:[%s112 + $0x30] sm:$0xff]
      %v127 = vld [vmem:[%s112 + $0x38] sm:$0xff]
      %v128 = vld [vmem:[%s112 + $0x40] sm:$0xff]
      %v129 = vld [vmem:[%s112 + $0x48] sm:$0xff]
      %v130 = vld [vmem:[%s112 + $0x50] sm:$0xff]
      %v131 = vld [vmem:[%s112 + $0x58] sm:$0xff]
      %v132 = vld [vmem:[%s112 + $0x60] sm:$0xff]
      %v133 = vld [vmem:[%s112 + $0x68] sm:$0xff]
      %v134 = vld [vmem:[%s112 + $0x70] sm:$0xff]
      %v135 = vld [vmem:[%s112 + $0x78] sm:$0xff]
      %136 = vst [vmem:[%s118] sm:$0xff] %v120
      %137 = vst [vmem:[%s118 + $0x8] sm:$0xff] %v121
      %138 = vst [vmem:[%s118 + $0x10] sm:$0xff] %v122
      %139 = vst [vmem:[%s118 + $0x18] sm:$0xff] %v123
      %140 = vst [vmem:[%s118 + $0x20] sm:$0xff] %v124
      %141 = vst [vmem:[%s118 + $0x28] sm:$0xff] %v125
      %142 = vst [vmem:[%s118 + $0x30] sm:$0xff] %v126
      %143 = vst [vmem:[%s118 + $0x38] sm:$0xff] %v127
      %144 = vst [vmem:[%s118 + $0x40] sm:$0xff] %v128
      %145 = vst [vmem:[%s118 + $0x48] sm:$0xff] %v129
      %146 = vst [vmem:[%s118 + $0x50] sm:$0xff] %v130
      %147 = vst [vmem:[%s118 + $0x58] sm:$0xff] %v131
      %148 = vst [vmem:[%s118 + $0x60] sm:$0xff] %v132
      %149 = vst [vmem:[%s118 + $0x68] sm:$0xff] %v133
      %150 = vst [vmem:[%s118 + $0x70] sm:$0xff] %v134
      %151 = vst [vmem:[%s118 + $0x78] sm:$0xff] %v135
      %s152 = smul.u32 16, %s12
      %p153 = scmp.lt.s32.totalorder %s152, 31
      %s154 = scalar_select %p153, %s152, 31
      %s155 = smul.addr %s154, 8
      %s156 = scalar_lea.vmem %s1, %s155
      // Predicated region
      $region25: #{dummy_time_bucket_forward.1} parent=23 // pred_check
        %p157 = pneg %p56
      $region26: #{dummy_time_bucket_forward.1} parent=23 // pred_check_branch
        %159 = sbr.rel (%p157) target = $region28
      $region27: #{dummy_time_bucket_forward.1} parent=23 // pred_region
        %s160 = smul.u32 16, %s12
      $region28: #{dummy_time_bucket_forward.1} parent=23 // pred_fallthru
        _
    $region24: #{dummy_time_bucket_forward.1} parent=5 // pred_fallthru
      _
    %p161 = scmp.le.s32.totalorder 2, %s7
    // Predicated region
    $region29: #{dummy_time_bucket_forward.1} parent=5 // pred_check
      %p162 = pneg %p161
    $region30: #{dummy_time_bucket_forward.1} parent=5 // pred_check_branch
      %164 = sbr.rel (%p162) target = $region32
    $region31: #{dummy_time_bucket_forward.1} parent=5 // pred_region
      %s165 = ssub.s32 %s7, 2
      // Predicated region
      $region33: #{dummy_time_bucket_forward.1} parent=31 // pred_check
        %p166 = pneg %p62
      $region34: #{dummy_time_bucket_forward.1} parent=31 // pred_check_branch
        %168 = sbr.rel (%p166) target = $region36
      $region35: #{dummy_time_bucket_forward.1} parent=31 // pred_region
        %s169 = smul.u32 16, %s13
        %p170 = scmp.lt.s32.totalorder %s169, 31
        %s171 = scalar_select %p170, %s169, 31
        %s172 = smul.addr %s171, 8
        %s173 = scalar_lea.vmem %s1, %s172
      $region36: #{dummy_time_bucket_forward.1} parent=31 // pred_fallthru
        _
    $region32: #{dummy_time_bucket_forward.1} parent=5 // pred_fallthru
      _
  $region6: #{dummy_time_bucket_forward.1} parent=0 // loop_footer
    %s11 = sadd.s32 1, %s7
  $region7: #{dummy_time_bucket_forward.1} parent=0 // loop_footer_branch
    %6 = sbr.rel target = $region3
  $region8: #{dummy_time_bucket_forward.1} parent=0 // loop_exit
    _

</llo_original>
